<compile_context>
chip_gen: v5e
topology: v5e:2x2
jax: 0.10.0
libtpu: 0.0.40
codegen_flags: <defaults>
</compile_context>

<pallas_src>
import math

import jax
import jax.numpy as jnp
from jax.experimental import pallas as pl
from jax.experimental.pallas import tpu as pltpu


_SQRT_2_OVER_PI = math.sqrt(2.0 / math.pi)


def _gelu_kernel(z_ref, o_ref):
    z = z_ref[...]
    zf = z.astype(jnp.float32)
    inner = _SQRT_2_OVER_PI * (zf + 0.044715 * zf * zf * zf)
    res = 0.5 * zf * (1.0 + jnp.tanh(inner))
    # TODO(synk): on v7x+bf16, if a bundle dump shows the single EUP tanh slot
    # binding, swap jnp.tanh for a VPU-only rational approximation.
    o_ref[...] = res.astype(o_ref.dtype)


def _pick_layout(shape):
    """Choose a lane-dense (rows, width) 2D view of the flattened tensor."""
    total = 1
    for d in shape:
        total *= d
    # Prefer a wide, lane-dense slab: width is a large multiple of 128 that
    # divides the element count exactly (no padding, unmasked full-width vst).
    for c in (4096, 2048, 1024, 512, 256, 128):
        if total % c == 0:
            return total // c, c
    # Fallback: (rows, last_dim). The last dim then equals the full array dim,
    # so the (8,128) block rule is still satisfied even if last_dim % 128 != 0.
    hidden = shape[-1]
    return total // hidden, hidden


def gelu_pallas(z: jax.Array, *, target_block_bytes: int = 4 * 1024 * 1024) -> jax.Array:
    """Tanh-approx GELU, elementwise, via a Pallas TPU kernel."""
    orig_shape = z.shape
    rows, width = _pick_layout(orig_shape)
    z2d = z.reshape(rows, width)

    itemsize = jnp.dtype(z.dtype).itemsize
    bytes_per_row = max(1, width * itemsize)
    tile_r = max(1, target_block_bytes // bytes_per_row)
    if tile_r >= rows:
        # Block covers the full sublane extent -> always a legal block shape.
        tile_r = rows
    else:
        # Keep the sublane dim a multiple of 8 for clean (8,128) tiling.
        tile_r = max(8, (tile_r // 8) * 8)

    # Partial edge block (rows % tile_r != 0) is handled by Pallas: reads are
    # padded, out-of-bounds writes are masked. Elementwise -> always correct.
    grid = (pl.cdiv(rows, tile_r),)

    out = pl.pallas_call(
        _gelu_kernel,
        out_shape=jax.ShapeDtypeStruct((rows, width), z.dtype),
        grid_spec=pltpu.PrefetchScalarGridSpec(
            num_scalar_prefetch=0,
            grid=grid,
            in_specs=[pl.BlockSpec((tile_r, width), lambda i: (i, 0))],
            out_specs=pl.BlockSpec((tile_r, width), lambda i: (i, 0)),
        ),
        compiler_params=pltpu.CompilerParams(
            dimension_semantics=("parallel",),
            # 2 bufs x (in + out) x ~4 MiB blocks stays well under this on
            # every generation, including v7x's 64 MiB physical VMEM.
            vmem_limit_bytes=48 * 1024 * 1024,
        ),
    )(z2d)

    return out.reshape(orig_shape)


def gelu_reference(z: jax.Array) -> jax.Array:
    zf = z.astype(jnp.float32)
    return (
        0.5 * zf * (1.0 + jnp.tanh(_SQRT_2_OVER_PI * (zf + 0.044715 * zf ** 3)))
    ).astype(z.dtype)


if __name__ == "__main__":
    key = jax.random.PRNGKey(0)
    # Former tokens: (batch=2, seq=8, hidden=32)
    z = jax.random.normal(key, (2, 8, 32), dtype=jnp.float32)

    out = gelu_pallas(z)
    out = jax.block_until_ready(out)

    ref = gelu_reference(z)
    assert out.shape == z.shape and out.dtype == z.dtype
    assert jnp.allclose(out, ref, atol=1e-5, rtol=1e-5), "mismatch vs reference"

    print("KERNEL_OK")
</pallas_src>

<mosaic_0001>
module attributes {stable_mosaic.version = 11 : i64} {
  func.func @_gelu_kernel(%arg0: i32, %arg1: memref<1x512xf32, #tpu.memory_space<vmem>>, %arg2: memref<1x512xf32, #tpu.memory_space<vmem>>) attributes {dimension_semantics = [#tpu.dimension_semantics<parallel>], iteration_bounds = array<i64: 1>, scalar_prefetch = 0 : i64, scratch_operands = 0 : i64, tpu.core_type = #tpu.core_type<tc>, window_params = [{transform_indices = @transform_0, window_bounds = array<i64: 1, 512>}, {transform_indices = @transform_1, window_bounds = array<i64: 1, 512>}]} {
    %c0 = arith.constant 0 : index
    %c0_0 = arith.constant 0 : index
    %0 = vector.load %arg1[%c0, %c0_0] : memref<1x512xf32, #tpu.memory_space<vmem>>, vector<1x512xf32>
    %cst = arith.constant 4.471500e-02 : f32
    %1 = vector.broadcast %cst : f32 to vector<1x512xf32>
    %2 = arith.mulf %1, %0 : vector<1x512xf32>
    %3 = arith.mulf %2, %0 : vector<1x512xf32>
    %4 = arith.mulf %3, %0 : vector<1x512xf32>
    %5 = arith.addf %0, %4 : vector<1x512xf32>
    %cst_1 = arith.constant 0.797884583 : f32
    %6 = vector.broadcast %cst_1 : f32 to vector<1x512xf32>
    %7 = arith.mulf %6, %5 : vector<1x512xf32>
    %cst_2 = arith.constant 5.000000e-01 : f32
    %8 = vector.broadcast %cst_2 : f32 to vector<1x512xf32>
    %9 = arith.mulf %8, %0 : vector<1x512xf32>
    %10 = math.tanh %7 : vector<1x512xf32>
    %cst_3 = arith.constant 1.000000e+00 : f32
    %11 = vector.broadcast %cst_3 : f32 to vector<1x512xf32>
    %12 = arith.addf %11, %10 : vector<1x512xf32>
    %13 = arith.mulf %9, %12 : vector<1x512xf32>
    %c0_4 = arith.constant 0 : index
    %c0_5 = arith.constant 0 : index
    %14 = vector.load %arg2[%c0_4, %c0_5] : memref<1x512xf32, #tpu.memory_space<vmem>>, vector<1x512xf32>
    tpu.vector_store %arg2[%c0_4, %c0_5], %13 {strides = array<i32>} : memref<1x512xf32, #tpu.memory_space<vmem>>, vector<1x512xf32>,
    return
  }
  func.func @transform_0(%arg0: i32) -> (i32, i32) {
    %c0_i32 = arith.constant 0 : i32
    %c0_i32_0 = arith.constant 0 : i32
    return %arg0, %c0_i32 : i32, i32
  }
  func.func @transform_1(%arg0: i32) -> (i32, i32) {
    %c0_i32 = arith.constant 0 : i32
    %c0_i32_0 = arith.constant 0 : i32
    return %arg0, %c0_i32 : i32, i32
  }
}

</mosaic_0001>

<llo_original>
// kernel: tpu_custom_call.1
$region0: #{tpu_custom_call.1}
  #allocation0 [shape = 'u32[]', space=smem, size = 0x4, offset = 0x4, fixed_abs, tag = 'smem constant byte address 0x4 - core index']
  #allocation1 [shape = 'u32[72,128]{1,0:T(1,128)}', space=vmem, size = 0x9000, scoped, tag = 'internal scratch']
  %s0 = inlined_call_operand.hbm [shape: f32[1,512], index: 0, kind: input, shape index: {}]
  %s1 = inlined_call_operand.hbm [shape: f32[1,512], index: 1, kind: output, shape index: {}]
  %s2 = sld [smem:[#allocation0]]
  $region18: #{tpu_custom_call.1} parent=0
    _
  %s4 = ssub.s32 1, %s2
  %s5 = scalar_select 0, %s4, %s2
  $region1: #{tpu_custom_call.1} parent=0
    #allocation2 [shape = 'u8[2048]{0}', space=vmem, size = 0x800, scoped, tag = 'input window, operand 0, single buffered']
    #allocation3 [shape = 's32[1]{0}', space=sflag, size = 0x4, scoped, tag = 'scoped memory for tpu_custom_call.1']
    #allocation4 [shape = 's32[1]{0}', space=sflag, size = 0x4, scoped, tag = 'scoped memory for tpu_custom_call.1']
    #allocation5 [shape = 'u8[2048]{0}', space=vmem, size = 0x800, scoped, tag = 'output window, operand 0, single buffered']
    %6 = vsyncpa [#allocation3], 0
    %7 = vsyncpa [#allocation4], 0
    // Predicated region
    $region2: #{tpu_custom_call.1} parent=1 // pred_check
      _
    $region3: #{tpu_custom_call.1} parent=1 // pred_check_branch
      %9 = sbr.rel (0) target = $region5
    $region4: #{tpu_custom_call.1} parent=1 // pred_region
      %11 = vsyncadd [#allocation3], 0
      %s13 = sshll.u32 %s0, 4
      %s14 = int_to_ptr.hbm [resolvable:$true] %s13
      %s15 = sshll.u32 [#allocation2], 4
      %s16 = int_to_ptr.vmem [resolvable:$true] %s15
      %18 = dma.hbm_to_vmem [thread:$0]  %s14, 64, %s16, [#allocation3]
    $region5: #{tpu_custom_call.1} parent=1 // pred_fallthru
      _
    // Predicated region
    $region6: #{tpu_custom_call.1} parent=1 // pred_check
      _
    $region7: #{tpu_custom_call.1} parent=1 // pred_check_branch
      %20 = sbr.rel (0) target = $region9
    $region8: #{tpu_custom_call.1} parent=1 // pred_region
      %22 = dma.done [#allocation3], 64
    $region9: #{tpu_custom_call.1} parent=1 // pred_fallthru
      _
    %v23 = vld [vmem:[#allocation2] sm:$0xf]
    %v24 = vmul.f32 %v23, 0.044715
    %v25 = vmul.f32 %v24, %v23
    %v26 = vmul.f32 %v25, %v23
    %v27 = vadd.f32 %v23, %v26
    %v28 = vmul.f32 %v27, 0.7978846
    %v29 = vmul.f32 %v23, 0.5
    %v30 = vtanh.pop %v28
    %v31 = vadd.f32 %v30, 1.0
    %v32 = vmul.f32 %v29, %v31
    %v33 = vlaneseq
    %vm34 = vcmp.ge.s32.totalorder %v33, 0
    %vm35 = vcmp.lt.s32.totalorder %v33, 512
    %vm36 = vmand %vm34, %vm35
    %37 = vst.msk [vmem:[#allocation5] sm:$0xf] %vm36, %v32
    // Predicated region
    $region10: #{tpu_custom_call.1} parent=1 // pred_check
      _
    $region11: #{tpu_custom_call.1} parent=1 // pred_check_branch
      %39 = sbr.rel (0) target = $region13
    $region12: #{tpu_custom_call.1} parent=1 // pred_region
      %41 = vsyncadd [#allocation4], 0
      %s43 = sshll.u32 [#allocation5], 4
      %s44 = int_to_ptr.vmem [resolvable:$true] %s43
      %s45 = sshll.u32 %s1, 4
      %s46 = int_to_ptr.hbm [resolvable:$true] %s45
      %48 = dma.vmem_to_hbm [thread:$0]  %s44, 64, %s46, [#allocation4]
    $region13: #{tpu_custom_call.1} parent=1 // pred_fallthru
      _
    // Predicated region
    $region14: #{tpu_custom_call.1} parent=1 // pred_check
      _
    $region15: #{tpu_custom_call.1} parent=1 // pred_check_branch
      %50 = sbr.rel (0) target = $region17
    $region16: #{tpu_custom_call.1} parent=1 // pred_region
      %52 = dma.done [#allocation4], 64
    $region17: #{tpu_custom_call.1} parent=1 // pred_fallthru
      _
    %53 = vsyncpa [#allocation3], 1
    %54 = vsyncpa [#allocation4], 1

</llo_original>
